<compile_context>
chip_gen: v7x
topology: tpu7x:2x2x1
jax: 0.10.0
libtpu: 0.0.40
codegen_flags: <defaults>
</compile_context>

<pallas_src>
import math

import jax
import jax.numpy as jnp
from jax.experimental import pallas as pl
from jax.experimental.pallas import tpu as pltpu


def _pos_add_kernel(x_ref, pe_ref, o_ref):
    """x_ref/o_ref: (b_tile, rows_per_tile, lanes); pe_ref: (rows_per_tile, lanes).

    Eval-mode dropout == identity; add in f32, single cast on store.
    """
    o_ref[...] = (x_ref[...].astype(jnp.float32)
                  + pe_ref[...][None, :, :]).astype(o_ref.dtype)


def _sinusoidal_pe(seq_len: int, d_model: int, start_idx: int) -> jax.Array:
    """(seq_len, d_model) f32 plane == PyTorch buffer slice pe[start_idx:start_idx+S]."""
    pos = (jnp.arange(seq_len, dtype=jnp.float32) + jnp.float32(start_idx))[:, None]
    inv_freq = jnp.exp(jnp.arange(0, d_model, 2, dtype=jnp.float32)
                       * jnp.float32(-math.log(10000.0) / d_model))
    ang = pos * inv_freq[None, :]                                   # (S, D//2)
    # interleave: even channels = sin, odd channels = cos
    return jnp.stack([jnp.sin(ang), jnp.cos(ang)], axis=-1).reshape(seq_len, d_model)


def positional_encoding(x: jax.Array, start_idx: int = 0, dropout: float = 0.1) -> jax.Array:
    """Pallas equivalent of PositionalEncoding(d_model, start_idx, dropout)(x), eval mode.

    x: (B, S, D) — in RATransformer this is the (b*m, t, d_model) embedded stream.
    """
    del dropout  # identity in eval/inference mode
    B, S, D = x.shape
    itemsize = x.dtype.itemsize

    pe = _sinusoidal_pe(S, D, start_idx)                            # (S, D) f32

    # ---- lane-dense layout: flatten to 128-lane rows whenever D % 128 != 0 ----
    if D % 128 == 0:
        lanes, rows, tail_pad = D, S, 0
        x_view, pe_view = x, pe
    else:
        flat = S * D
        lanes = 128
        rows = pl.cdiv(flat, lanes)
        tail_pad = rows * lanes - flat
        x_flat = x.reshape(B, flat)
        pe_flat = pe.reshape(flat)
        if tail_pad:
            x_flat = jnp.pad(x_flat, ((0, 0), (0, tail_pad)))
            pe_flat = jnp.pad(pe_flat, (0, tail_pad))
        x_view = x_flat.reshape(B, rows, lanes)
        pe_view = pe_flat.reshape(rows, lanes)

    # ---- tile sizing ----
    sub = max(8, 32 // itemsize)                 # sublane rounding: 8 f32 / 16 bf16 / 32 int8
    target_elems = (2 * 1024 * 1024) // itemsize  # ~2 MiB of x per block
    cap_rows = max(sub, target_elems // lanes)
    plane_bytes = rows * lanes * itemsize

    if cap_rows >= rows:
        if plane_bytes >= 2 * 1024 * 1024 and rows >= 2 * sub:
            # Keep the "parallel" row axis at extent >= 2 so both v7x TCs get work.
            rows_per_tile = min(rows, pl.cdiv(pl.cdiv(rows, 2), sub) * sub)
        else:
            rows_per_tile = rows                 # full extent (always legal)
    else:
        rows_per_tile = max(sub, (cap_rows // sub) * sub)

    # Fold batch elements into one block when a whole-plane tile is still tiny
    # (decode S=1 / small S*D) so each grid step moves >= ~512 KiB.
    block_bytes = rows_per_tile * lanes * itemsize
    if rows_per_tile == rows and block_bytes < 512 * 1024:
        b_tile = min(B, max(1, (512 * 1024) // max(1, block_bytes)))
    else:
        b_tile = 1

    grid = (pl.cdiv(rows, rows_per_tile), pl.cdiv(B, b_tile))

    x_block_bytes = b_tile * rows_per_tile * lanes * itemsize
    pe_block_bytes = rows_per_tile * lanes * 4
    vmem_limit = min(32 * 1024 * 1024,
                     max(16 * 1024 * 1024, 2 * (4 * x_block_bytes + 2 * pe_block_bytes)))

    out = pl.pallas_call(
        _pos_add_kernel,
        out_shape=jax.ShapeDtypeStruct((B, rows, lanes), x.dtype),
        grid_spec=pltpu.PrefetchScalarGridSpec(
            num_scalar_prefetch=0,
            grid=grid,
            in_specs=[
                pl.BlockSpec((b_tile, rows_per_tile, lanes), lambda r, b: (b, r, 0)),
                # Same block index across the (innermost) batch axis -> the PE tile is
                # DMA'd once per row tile and reused for every batch step.
                pl.BlockSpec((rows_per_tile, lanes), lambda r, b: (r, 0)),
            ],
            out_specs=pl.BlockSpec((b_tile, rows_per_tile, lanes), lambda r, b: (b, r, 0)),
        ),
        compiler_params=pltpu.CompilerParams(
            # Row tiles feed both v7x TensorCores; batch stays "arbitrary" so the PE
            # block (constant index across b) is reused instead of re-fetched.
            dimension_semantics=("parallel", "arbitrary"),
            vmem_limit_bytes=vmem_limit,
        ),
        # TODO(synk): pass input_output_aliases={0: 0} when the caller donates x
        # (it is dead after this op inside RATransformer) to drop the extra HBM buffer.
    )(x_view, pe_view)

    if D % 128 == 0:
        return out
    out_flat = out.reshape(B, rows * lanes)
    if tail_pad:
        out_flat = out_flat[:, :S * D]
    return out_flat.reshape(B, S, D)


def _reference(x: jax.Array, start_idx: int, max_len: int = 5000) -> jax.Array:
    """Pure-JAX reference mirroring the PyTorch buffer construction."""
    B, S, D = x.shape
    position = jnp.arange(0.0, max_len, dtype=jnp.float32)[:, None]
    div_term = jnp.exp(jnp.arange(0.0, D, 2, dtype=jnp.float32)
                       * (-(math.log(10000.0) / D)))
    pe = jnp.zeros((max_len, D), jnp.float32)
    pe = pe.at[:, 0::2].set(jnp.sin(position * div_term))
    pe = pe.at[:, 1::2].set(jnp.cos(position * div_term))
    return (x.astype(jnp.float32) + pe[None, start_idx:start_idx + S]).astype(x.dtype)


if __name__ == "__main__":
    k1, k2, k3 = jax.random.split(jax.random.PRNGKey(0), 3)

    # Config 1: small d_model (D=32 < 128) -> lane-dense flattened path, no tail pad.
    B, S, D = 2, 8, 32
    x = jax.random.normal(k1, (B, S, D), dtype=jnp.float32)
    out = jax.block_until_ready(positional_encoding(x, start_idx=3, dropout=0.1))
    ref = _reference(x, 3)
    assert out.shape == x.shape and out.dtype == x.dtype
    assert jnp.allclose(out, ref, atol=1e-5, rtol=1e-5), "mismatch vs reference (flat path)"

    # Config 2: lane-aligned d_model (D=128) -> natural (S, D) path.
    B2, S2, D2 = 2, 16, 128
    x2 = jax.random.normal(k2, (B2, S2, D2), dtype=jnp.float32)
    out2 = jax.block_until_ready(positional_encoding(x2, start_idx=0, dropout=0.1))
    ref2 = _reference(x2, 0)
    assert jnp.allclose(out2, ref2, atol=1e-5, rtol=1e-5), "mismatch vs reference (seq path)"

    # Config 3: D=96, odd S -> flattened path WITH tail padding (S*D % 128 != 0).
    B3, S3, D3 = 2, 5, 96
    x3 = jax.random.normal(k3, (B3, S3, D3), dtype=jnp.float32)
    out3 = jax.block_until_ready(positional_encoding(x3, start_idx=7, dropout=0.1))
    ref3 = _reference(x3, 7)
    assert out3.shape == x3.shape
    assert jnp.allclose(out3, ref3, atol=1e-5, rtol=1e-5), "mismatch vs reference (padded path)"

    print("KERNEL_OK")
</pallas_src>

<mosaic_0001>
module attributes {stable_mosaic.version = 11 : i64} {
  func.func @_pos_add_kernel(%arg0: i32, %arg1: i32, %arg2: memref<2x2x128xf32, #tpu.memory_space<vmem>>, %arg3: memref<2x128xf32, #tpu.memory_space<vmem>>, %arg4: memref<2x2x128xf32, #tpu.memory_space<vmem>>) attributes {dimension_semantics = [#tpu.dimension_semantics<parallel>, #tpu.dimension_semantics<arbitrary>], iteration_bounds = array<i64: 1, 1>, scalar_prefetch = 0 : i64, scratch_operands = 0 : i64, tpu.core_type = #tpu.core_type<tc>, window_params = [{transform_indices = @transform_0, window_bounds = array<i64: 2, 2, 128>}, {transform_indices = @transform_1, window_bounds = array<i64: 2, 128>}, {transform_indices = @transform_2, window_bounds = array<i64: 2, 2, 128>}]} {
    %c0 = arith.constant 0 : index
    %c0_0 = arith.constant 0 : index
    %c0_1 = arith.constant 0 : index
    %0 = vector.load %arg2[%c0, %c0_0, %c0_1] : memref<2x2x128xf32, #tpu.memory_space<vmem>>, vector<2x2x128xf32>
    %c0_2 = arith.constant 0 : index
    %c0_3 = arith.constant 0 : index
    %1 = vector.load %arg3[%c0_2, %c0_3] : memref<2x128xf32, #tpu.memory_space<vmem>>, vector<2x128xf32>
    %2 = vector.shape_cast %1 : vector<2x128xf32> to vector<1x2x128xf32>
    %3 = vector.broadcast %2 : vector<1x2x128xf32> to vector<2x2x128xf32>
    %4 = arith.addf %0, %3 : vector<2x2x128xf32>
    %c0_4 = arith.constant 0 : index
    %c0_5 = arith.constant 0 : index
    %c0_6 = arith.constant 0 : index
    %5 = vector.load %arg4[%c0_4, %c0_5, %c0_6] : memref<2x2x128xf32, #tpu.memory_space<vmem>>, vector<2x2x128xf32>
    tpu.vector_store %arg4[%c0_4, %c0_5, %c0_6], %4 {strides = array<i32>} : memref<2x2x128xf32, #tpu.memory_space<vmem>>, vector<2x2x128xf32>,
    return
  }
  func.func @transform_0(%arg0: i32, %arg1: i32) -> (i32, i32, i32) {
    %c0_i32 = arith.constant 0 : i32
    %c0_i32_0 = arith.constant 0 : i32
    return %arg1, %arg0, %c0_i32 : i32, i32, i32
  }
  func.func @transform_1(%arg0: i32, %arg1: i32) -> (i32, i32) {
    %c0_i32 = arith.constant 0 : i32
    %c0_i32_0 = arith.constant 0 : i32
    return %arg0, %c0_i32 : i32, i32
  }
  func.func @transform_2(%arg0: i32, %arg1: i32) -> (i32, i32, i32) {
    %c0_i32 = arith.constant 0 : i32
    %c0_i32_0 = arith.constant 0 : i32
    return %arg1, %arg0, %c0_i32 : i32, i32, i32
  }
}

</mosaic_0001>

<llo_original>
// kernel: tpu_custom_call.1
$region0: #{tpu_custom_call.1}
  #allocation0 [shape = 'u32[]', space=smem, size = 0x4, offset = 0x4, fixed_abs, tag = 'smem constant byte address 0x4 - core index']
  #allocation1 [shape = 'u32[144,128]{1,0:T(1,128)}', space=vmem, size = 0x12000, scoped, tag = 'internal scratch']
  %s0 = inlined_call_operand.hbm [shape: f32[2,2,128], index: 0, kind: input, shape index: {}]
  %s1 = inlined_call_operand.vmem [shape: f32[2,128], index: 1, kind: input, shape index: {}]
  %s2 = inlined_call_operand.hbm [shape: f32[2,2,128], index: 2, kind: output, shape index: {}]
  %s3 = sld [smem:[#allocation0]]
  $region22: #{tpu_custom_call.1} parent=0
    _
  %s5 = ssub.s32 1, %s3
  %s6 = scalar_select 0, %s5, %s3
  $region1: #{tpu_custom_call.1} parent=0
    #allocation2 [shape = 'u8[2048]{0}', space=vmem, size = 0x800, scoped, tag = 'input window, operand 0, single buffered']
    #allocation3 [shape = 's32[1]{0}', space=sflag, size = 0x4, scoped, tag = 'scoped memory for tpu_custom_call.1']
    #allocation4 [shape = 's32[1]{0}', space=sflag, size = 0x4, scoped, tag = 'scoped memory for tpu_custom_call.1']
    #allocation5 [shape = 'u8[2048]{0}', space=vmem, size = 0x800, scoped, tag = 'output window, operand 0, single buffered']
    %7 = vsyncpa [#allocation3], 0
    %8 = vsyncpa [#allocation4], 0
    // Predicated region
    $region2: #{tpu_custom_call.1} parent=1 // pred_check
      _
    $region3: #{tpu_custom_call.1} parent=1 // pred_check_branch
      %10 = sbr.rel (0) target = $region5
    $region4: #{tpu_custom_call.1} parent=1 // pred_region
      %s12 = ssub.s32 64, 64
      %13 = vsyncadd [#allocation3], %s12
      %s14 = sshll.u32 [#allocation2], 4
      %s15 = int_to_ptr.vmem [resolvable:$true] %s14
      %20 = dma.hbm_to_vmem [thread:$0]  %s0, 64, %s15, [#allocation3], 32, 32, 2
    $region5: #{tpu_custom_call.1} parent=1 // pred_fallthru
      _
    // Predicated region
    $region6: #{tpu_custom_call.1} parent=1 // pred_check
      _
    $region7: #{tpu_custom_call.1} parent=1 // pred_check_branch
      %22 = sbr.rel (0) target = $region9
    $region8: #{tpu_custom_call.1} parent=1 // pred_region
      _
    $region9: #{tpu_custom_call.1} parent=1 // pred_fallthru
      _
    // Predicated region
    $region10: #{tpu_custom_call.1} parent=1 // pred_check
      _
    $region11: #{tpu_custom_call.1} parent=1 // pred_check_branch
      %24 = sbr.rel (0) target = $region13
    $region12: #{tpu_custom_call.1} parent=1 // pred_region
      %25 = dma.done [#allocation3], 64
    $region13: #{tpu_custom_call.1} parent=1 // pred_fallthru
      _
    %v26 = vld [vmem:[#allocation2] sm:$0x3]
    %v27 = vld [vmem:[#allocation2 + $0x2] sm:$0x3]
    %v28 = vld [vmem:[%s1] sm:$0x3]
    %v29 = vadd.f32 %v26, %v28
    %v30 = vadd.f32 %v27, %v28
    %31 = vst [vmem:[#allocation5] sm:$0x3] %v29
    %32 = vst [vmem:[#allocation5 + $0x2] sm:$0x3] %v30
    // Predicated region
    $region14: #{tpu_custom_call.1} parent=1 // pred_check
      _
    $region15: #{tpu_custom_call.1} parent=1 // pred_check_branch
      %34 = sbr.rel (0) target = $region17
    $region16: #{tpu_custom_call.1} parent=1 // pred_region
      %s36 = ssub.s32 64, 64
      %37 = vsyncadd [#allocation4], %s36
      %s38 = sshll.u32 [#allocation5], 4
      %s39 = int_to_ptr.vmem [resolvable:$true] %s38
      %44 = dma.vmem_to_hbm [thread:$0]  %s39, 64, %s2, [#allocation4], 32, 32, 2
    $region17: #{tpu_custom_call.1} parent=1 // pred_fallthru
      _
    // Predicated region
    $region18: #{tpu_custom_call.1} parent=1 // pred_check
      _
    $region19: #{tpu_custom_call.1} parent=1 // pred_check_branch
      %46 = sbr.rel (0) target = $region21
    $region20: #{tpu_custom_call.1} parent=1 // pred_region
      %47 = dma.done [#allocation4], 64
    $region21: #{tpu_custom_call.1} parent=1 // pred_fallthru
      _
    %48 = vsyncpa [#allocation3], 1
    %49 = vsyncpa [#allocation4], 1

</llo_original>
